<compile_context>
chip_gen: v7x
topology: tpu7x:2x2x1
jax: 0.10.0
libtpu: 0.0.40
codegen_flags: <defaults>
</compile_context>

<pallas_src>
import jax
import jax.numpy as jnp
from jax.experimental import pallas as pl
from jax.experimental.pallas import tpu as pltpu


def encoder_block_kernel(x_ref,      # (1, C, T)  input tile
                         w1_ref,     # (R, C)     spatial fc1 (1x1 conv) weight
                         b1_ref,     # (R, 1)     spatial fc1 bias
                         w2_ref,     # (R, 1)     spatial fc2 (1x1 conv) weight
                         b2_ref,     # (1, 1)     spatial fc2 bias (SMEM scalar)
                         g2_ref,     # (1, C, 1)  precomputed channel gate
                         o_ref):     # (1, C, T)  output tile
    x = x_ref[0]                                                   # (C, T)

    # ---- Spatial attention gate (per-pixel MLP over channels) ----------
    s1 = jnp.dot(w1_ref[...], x, preferred_element_type=jnp.float32)  # (R, T)
    s1 = jnp.maximum(s1 + b1_ref[...], 0.0)
    # R -> 1 contraction as a weighted row-sum (keeps the MXU for the big matmul).
    s2 = jnp.sum(s1 * w2_ref[...], axis=0, keepdims=True) + b2_ref[0, 0]  # (1, T)
    g1 = jax.nn.sigmoid(s2)                                        # (1, T)

    # ---- Combine with precomputed channel gate --------------------------
    g2 = g2_ref[0]                                                 # (C, 1)
    o_ref[0] = x * (g1 + g2)                                       # (C, T)


def _pick_tile(hw, cap):
    """Largest multiple of 128 that divides hw and is <= cap (fallback: hw)."""
    if hw % 128 != 0:
        return hw
    best, t = 128, 128
    while t <= min(hw, cap):
        if hw % t == 0:
            best = t
        t += 128
    return best


def encoder_block(x_nchw, params, *, tile_hw=2048):
    """x_nchw: (B, C, H, W) float32.  Returns (B, C, H, W) float32."""
    B, C, H, W = x_nchw.shape
    HW = H * W
    x = x_nchw.reshape(B, C, HW)                    # free reshape (stays contiguous)

    (w1s, b1s, w2s, b2s, wc1, bc1, wc2, bc2) = params
    R = w1s.shape[0]

    # ---- Channel gate precomputed in plain JAX (tiny (B, C)-sized work) ----
    y = jnp.mean(x, axis=2)                         # (B, C)   global avg pool
    h = jnp.maximum(y @ wc1 + bc1, 0.0)             # (B, C//r)
    g2 = jax.nn.sigmoid(h @ wc2 + bc2)              # (B, C)
    g2 = g2[:, :, None]                             # (B, C, 1)

    # ---- Lane-dense HW tiling -------------------------------------------
    T = _pick_tile(HW, tile_hw)
    n_t = HW // T

    grid_spec = pltpu.PrefetchScalarGridSpec(
        num_scalar_prefetch=0,
        grid=(B, n_t),
        in_specs=[
            pl.BlockSpec((1, C, T), lambda b, t: (b, 0, t)),            # x tile
            pl.BlockSpec((R, C), lambda b, t: (0, 0)),                  # w1 (spatial fc1)
            pl.BlockSpec((R, 1), lambda b, t: (0, 0)),                  # b1
            pl.BlockSpec((R, 1), lambda b, t: (0, 0)),                  # w2 (spatial fc2)
            pl.BlockSpec(memory_space=pltpu.MemorySpace.SMEM),          # b2 scalar
            pl.BlockSpec((1, C, 1), lambda b, t: (b, 0, 0)),            # g2 (channel gate)
        ],
        out_specs=pl.BlockSpec((1, C, T), lambda b, t: (b, 0, t)),
    )

    out = pl.pallas_call(
        encoder_block_kernel,
        out_shape=jax.ShapeDtypeStruct((B, C, HW), jnp.float32),
        grid_spec=grid_spec,
        compiler_params=pltpu.CompilerParams(
            dimension_semantics=("parallel", "parallel"),
            vmem_limit_bytes=32 * 1024 * 1024),
    )(x, w1s, b1s, w2s, b2s, g2)

    return out.reshape(B, C, H, W)


def reference(x_nchw, params):
    """Pure-JAX reference matching the PyTorch forward (block = identity)."""
    (w1s, b1s, w2s, b2s, wc1, bc1, wc2, bc2) = params
    B, C, H, W = x_nchw.shape
    x = x_nchw.reshape(B, C, H * W)
    # spatial gate (1x1 convs over channels)
    s1 = jnp.maximum(jnp.einsum('rc,bcp->brp', w1s, x) + b1s[None], 0.0)      # (B, R, HW)
    g1 = jax.nn.sigmoid(jnp.sum(s1 * w2s[None], axis=1, keepdims=True)
                        + b2s[0, 0])                                          # (B, 1, HW)
    # channel gate
    y = jnp.mean(x, axis=2)                                                   # (B, C)
    h = jnp.maximum(y @ wc1 + bc1, 0.0)
    g2 = jax.nn.sigmoid(h @ wc2 + bc2)[:, :, None]                            # (B, C, 1)
    out = x * g1 + x * g2
    return out.reshape(B, C, H, W)


def init_params(key, C, reduction=16):
    R = reduction
    Cr = max(C // reduction, 1)
    ks = jax.random.split(key, 8)
    scale = 0.1
    w1s = scale * jax.random.normal(ks[0], (R, C), jnp.float32)   # spatial conv1 (1x1): C -> R
    b1s = scale * jax.random.normal(ks[1], (R, 1), jnp.float32)
    w2s = scale * jax.random.normal(ks[2], (R, 1), jnp.float32)   # spatial conv2 (1x1): R -> 1
    b2s = scale * jax.random.normal(ks[3], (1, 1), jnp.float32)
    wc1 = scale * jax.random.normal(ks[4], (C, Cr), jnp.float32)  # channel linear1: C -> C//r
    bc1 = scale * jax.random.normal(ks[5], (Cr,), jnp.float32)
    wc2 = scale * jax.random.normal(ks[6], (Cr, C), jnp.float32)  # channel linear2: C//r -> C
    bc2 = scale * jax.random.normal(ks[7], (C,), jnp.float32)
    return (w1s, b1s, w2s, b2s, wc1, bc1, wc2, bc2)


if __name__ == "__main__":
    key = jax.random.PRNGKey(0)
    kx, kp = jax.random.split(key)

    B, C, H, W = 2, 32, 16, 16     # out_channels = 32, reduction = 16
    x = jax.random.normal(kx, (B, C, H, W), jnp.float32)
    params = init_params(kp, C, reduction=16)

    # tile_hw=128 forces the tiled-HW path (grid = (2, 2)) at this small shape.
    out = jax.block_until_ready(encoder_block(x, params, tile_hw=128))
    ref = jax.block_until_ready(reference(x, params))

    assert out.shape == (B, C, H, W)
    assert jnp.allclose(out, ref, atol=1e-5, rtol=1e-5), "mismatch vs reference"
    print("KERNEL_OK")
</pallas_src>

<mosaic_0001>
module attributes {stable_mosaic.version = 11 : i64} {
  func.func @encoder_block_kernel(%arg0: i32, %arg1: i32, %arg2: memref<1x32x128xf32, #tpu.memory_space<vmem>>, %arg3: memref<16x32xf32, #tpu.memory_space<vmem>>, %arg4: memref<16x1xf32, #tpu.memory_space<vmem>>, %arg5: memref<16x1xf32, #tpu.memory_space<vmem>>, %arg6: memref<1x1xf32, #tpu.memory_space<smem>>, %arg7: memref<1x32x1xf32, #tpu.memory_space<vmem>>, %arg8: memref<1x32x128xf32, #tpu.memory_space<vmem>>) attributes {dimension_semantics = [#tpu.dimension_semantics<parallel>, #tpu.dimension_semantics<parallel>], iteration_bounds = array<i64: 2, 2>, scalar_prefetch = 0 : i64, scratch_operands = 0 : i64, tpu.core_type = #tpu.core_type<tc>, window_params = [{transform_indices = @transform_0, window_bounds = array<i64: 1, 32, 128>}, {pipeline_mode = #tpu.pipeline_mode<synchronous>, transform_indices = @transform_1, window_bounds = array<i64: 16, 32>}, {pipeline_mode = #tpu.pipeline_mode<synchronous>, transform_indices = @transform_2, window_bounds = array<i64: 16, 1>}, {pipeline_mode = #tpu.pipeline_mode<synchronous>, transform_indices = @transform_3, window_bounds = array<i64: 16, 1>}, {transform_indices = @transform_4, window_bounds = array<i64: 1, 1>}, {transform_indices = @transform_5, window_bounds = array<i64: 1, 32, 1>}, {transform_indices = @transform_6, window_bounds = array<i64: 1, 32, 128>}]} {
    %c0 = arith.constant 0 : index
    %c0_0 = arith.constant 0 : index
    %c0_1 = arith.constant 0 : index
    %0 = vector.load %arg2[%c0, %c0_0, %c0_1] : memref<1x32x128xf32, #tpu.memory_space<vmem>>, vector<1x32x128xf32>
    %1 = vector.shape_cast %0 : vector<1x32x128xf32> to vector<32x128xf32>
    %c0_2 = arith.constant 0 : index
    %c0_3 = arith.constant 0 : index
    %2 = vector.load %arg3[%c0_2, %c0_3] : memref<16x32xf32, #tpu.memory_space<vmem>>, vector<16x32xf32>
    %cst = arith.constant dense<0.000000e+00> : vector<16x128xf32>
    %3 = tpu.matmul %2, %1, %cst {dimension_numbers = #tpu.dot_dimension_numbers<[1], [0], [0], [1], [0, 0, 1, 1], [], []>} : vector<16x32xf32>, vector<32x128xf32>, vector<16x128xf32> -> vector<16x128xf32>
    %c0_4 = arith.constant 0 : index
    %c0_5 = arith.constant 0 : index
    %4 = vector.load %arg4[%c0_4, %c0_5] : memref<16x1xf32, #tpu.memory_space<vmem>>, vector<16x1xf32>
    %5 = vector.broadcast %4 : vector<16x1xf32> to vector<16x128xf32>
    %6 = arith.addf %3, %5 : vector<16x128xf32>
    %cst_6 = arith.constant 0.000000e+00 : f32
    %7 = vector.broadcast %cst_6 : f32 to vector<16x128xf32>
    %8 = arith.maximumf %6, %7 : vector<16x128xf32>
    %c0_7 = arith.constant 0 : index
    %c0_8 = arith.constant 0 : index
    %9 = vector.load %arg5[%c0_7, %c0_8] : memref<16x1xf32, #tpu.memory_space<vmem>>, vector<16x1xf32>
    %10 = vector.broadcast %9 : vector<16x1xf32> to vector<16x128xf32>
    %11 = arith.mulf %8, %10 : vector<16x128xf32>
    %cst_9 = arith.constant dense<0.000000e+00> : vector<128xf32>
    %12 = vector.multi_reduction <add>, %11, %cst_9 [0] : vector<16x128xf32> to vector<128xf32>
    %13 = vector.shape_cast %12 : vector<128xf32> to vector<1x128xf32>
    %c0_10 = arith.constant 0 : index
    %c0_11 = arith.constant 0 : index
    %14 = memref.load %arg6[%c0_10, %c0_11] : memref<1x1xf32, #tpu.memory_space<smem>>
    %15 = vector.broadcast %14 : f32 to vector<1x128xf32>
    %16 = arith.addf %13, %15 : vector<1x128xf32>
    %17 = arith.negf %16 : vector<1x128xf32>
    %18 = math.exp %17 : vector<1x128xf32>
    %cst_12 = arith.constant 1.000000e+00 : f32
    %19 = vector.broadcast %cst_12 : f32 to vector<1x128xf32>
    %20 = arith.addf %19, %18 : vector<1x128xf32>
    %21 = arith.divf %19, %20 : vector<1x128xf32>
    %c0_13 = arith.constant 0 : index
    %c0_14 = arith.constant 0 : index
    %c0_15 = arith.constant 0 : index
    %22 = vector.load %arg7[%c0_13, %c0_14, %c0_15] : memref<1x32x1xf32, #tpu.memory_space<vmem>>, vector<1x32x1xf32>
    %23 = vector.shape_cast %22 : vector<1x32x1xf32> to vector<32x1xf32>
    %24 = vector.broadcast %21 : vector<1x128xf32> to vector<32x128xf32>
    %25 = vector.broadcast %23 : vector<32x1xf32> to vector<32x128xf32>
    %26 = arith.addf %24, %25 : vector<32x128xf32>
    %27 = arith.mulf %1, %26 : vector<32x128xf32>
    %c0_16 = arith.constant 0 : index
    %c0_17 = arith.constant 0 : index
    %c0_18 = arith.constant 0 : index
    %28 = vector.load %arg8[%c0_16, %c0_17, %c0_18] : memref<1x32x128xf32, #tpu.memory_space<vmem>>, vector<1x32x128xf32>
    %29 = vector.shape_cast %28 : vector<1x32x128xf32> to vector<32x128xf32>
    %30 = vector.shape_cast %27 : vector<32x128xf32> to vector<1x32x128xf32>
    tpu.vector_store %arg8[%c0_16, %c0_17, %c0_18], %30 {strides = array<i32>} : memref<1x32x128xf32, #tpu.memory_space<vmem>>, vector<1x32x128xf32>,
    return
  }
  func.func @transform_0(%arg0: i32, %arg1: i32) -> (i32, i32, i32) {
    %c0_i32 = arith.constant 0 : i32
    %c0_i32_0 = arith.constant 0 : i32
    return %arg0, %c0_i32, %arg1 : i32, i32, i32
  }
  func.func @transform_1(%arg0: i32, %arg1: i32) -> (i32, i32) {
    %c0_i32 = arith.constant 0 : i32
    %c0_i32_0 = arith.constant 0 : i32
    %c0_i32_1 = arith.constant 0 : i32
    return %c0_i32, %c0_i32_0 : i32, i32
  }
  func.func @transform_2(%arg0: i32, %arg1: i32) -> (i32, i32) {
    %c0_i32 = arith.constant 0 : i32
    %c0_i32_0 = arith.constant 0 : i32
    %c0_i32_1 = arith.constant 0 : i32
    return %c0_i32, %c0_i32_0 : i32, i32
  }
  func.func @transform_3(%arg0: i32, %arg1: i32) -> (i32, i32) {
    %c0_i32 = arith.constant 0 : i32
    %c0_i32_0 = arith.constant 0 : i32
    %c0_i32_1 = arith.constant 0 : i32
    return %c0_i32, %c0_i32_0 : i32, i32
  }
  func.func @transform_4(%arg0: i32, %arg1: i32) -> (i32, i32) {
    %c0_i32 = arith.constant 0 : i32
    %c0_i32_0 = arith.constant 0 : i32
    %c0_i32_1 = arith.constant 0 : i32
    return %c0_i32, %c0_i32_0 : i32, i32
  }
  func.func @transform_5(%arg0: i32, %arg1: i32) -> (i32, i32, i32) {
    %c0_i32 = arith.constant 0 : i32
    %c0_i32_0 = arith.constant 0 : i32
    %c0_i32_1 = arith.constant 0 : i32
    return %arg0, %c0_i32, %c0_i32_0 : i32, i32, i32
  }
  func.func @transform_6(%arg0: i32, %arg1: i32) -> (i32, i32, i32) {
    %c0_i32 = arith.constant 0 : i32
    %c0_i32_0 = arith.constant 0 : i32
    return %arg0, %c0_i32, %arg1 : i32, i32, i32
  }
}

</mosaic_0001>

<llo_original>
// kernel: tpu_custom_call.1
$region0: #{tpu_custom_call.1}
  #allocation0 [shape = 'u32[]', space=smem, size = 0x4, offset = 0x4, fixed_abs, tag = 'smem constant byte address 0x4 - core index']
  #allocation1 [shape = 'u32[144,128]{1,0:T(1,128)}', space=vmem, size = 0x12000, scoped, tag = 'internal scratch']
  #allocation2 [shape = 'f32[1,1]{1,0:T(1,128)S(6)}', space=smem, size = 0x200, scoped, tag = 'scoped memory for tpu_custom_call.1']
  %s0 = inlined_call_operand.hbm [shape: f32[2,32,256], index: 0, kind: input, shape index: {}]
  %s1 = inlined_call_operand.vmem [shape: f32[16,32], index: 1, kind: input, shape index: {}]
  %s2 = inlined_call_operand.vmem [shape: f32[16,1], index: 2, kind: input, shape index: {}]
  %s3 = inlined_call_operand.vmem [shape: f32[16,1], index: 3, kind: input, shape index: {}]
  %s4 = inlined_call_operand.<no memory space> [shape: f32[1,1], index: 4, kind: input, shape index: {}]
  %s5 = inlined_call_operand.vmem [shape: f32[2,32,1], index: 5, kind: input, shape index: {}]
  %s6 = inlined_call_operand.hbm [shape: f32[2,32,256], index: 6, kind: output, shape index: {}]
  %s7 = sld [smem:[#allocation0]]
  $region61: #{tpu_custom_call.1} parent=0
    _
  %s9 = ssub.s32 1, %s7
  %s10 = scalar_select 0, %s9, %s7
  %11 = sst [smem:[#allocation2]] %s4
  $region1: #{tpu_custom_call.1} parent=0
    #allocation3 [shape = 'u8[32768]{0}', space=vmem, size = 0x8000, scoped, tag = 'input window, operand 0']
    #allocation4 [shape = 's32[2]{0}', space=sflag, size = 0x8, scoped, tag = 'scoped memory for tpu_custom_call.1']
    #allocation5 [shape = 's32[2]{0}', space=sflag, size = 0x8, scoped, tag = 'scoped memory for tpu_custom_call.1']
    #allocation6 [shape = 'u8[32768]{0}', space=vmem, size = 0x8000, scoped, tag = 'output window, operand 0']
    %12 = vsyncpa [#allocation4], 0
    %s13 = scalar_lea.sflag [#allocation4], 1
    %14 = vsyncpa %s13, 0
    %15 = vsyncpa [#allocation5], 0
    %s16 = scalar_lea.sflag [#allocation5], 1
    %17 = vsyncpa %s16, 0
    loop: start=0, step=1, limit=6
    $region2: #{tpu_custom_call.1} parent=1 // loop_pre_header
      _
    $region3: #{tpu_custom_call.1} parent=1 // loop_header
      %s19 = sphi 0, %s23
      %p20 = scmp.ge.s32.totalorder %s19, 6
      %s26 = sphi 0, %s38
      %s27 = sphi 0, %s34
      %s28 = sphi 0, %s26
      %s29 = sphi 0, %s27
      %s30 = sphi 0, %s28
      %s31 = sphi 0, %s29
      %s43 = sphi 0, %s45
      %s46 = sphi 0, %s43
      %s47 = sphi 0, %s46
      %s63 = sphi 0, %s47
      %s67 = sphi 0, %s67
      %s69 = sphi 0, %s67
      %s70 = sphi 0, %s69
      %s84 = sphi 0, %s70
      %s88 = sphi 0, %s88
      %s90 = sphi 0, %s88
      %s91 = sphi 0, %s90
      %s105 = sphi 0, %s91
      %s109 = sphi 0, %s109
      %s111 = sphi 0, %s109
      %s112 = sphi 0, %s111
      %s126 = sphi 0, %s112
      %s130 = sphi 0, %s130
      %s132 = sphi 0, %s130
      %s133 = sphi 0, %s132
      %s147 = sphi 0, %s133
      %s153 = sphi 0, %s155
      %s156 = sphi 0, %s153
      %s157 = sphi 0, %s156
      %s173 = sphi 0, %s157
      %s181 = sphi 0, %s183
      %s184 = sphi 0, %s181
      %s185 = sphi 0, %s184
      %s201 = sphi 0, %s185
    $region4: #{tpu_custom_call.1} parent=1 // loop_header_branch
      %22 = sbr.rel (%p20) target = $region8
    $region5: #{tpu_custom_call.1} parent=1 // loop_body
      %s24 = ssub.s32 %s19, 1
      %s25 = ssub.s32 %s19, 2
      %s32 = sadd.s32 1, %s27
      %p33 = scmp.ge.s32.totalorder %s32, 2
      %s34 = scalar_select %p33, 0, %s32
      %s35 = sadd.s32 1, %s26
      %s36 = scalar_select %p33, %s35, %s26
      %p37 = scmp.ge.s32.totalorder %s36, 2
      %s38 = scalar_select %p37, 0, %s36
      %s39 = ssub.s32 %s26, %s38
      %s40 = ssub.s32 %s27, %s34
      %s41 = sor.u32 %s39, %s40
      %p42 = scmp.eq.s32.totalorder %s41, 0
      %s44 = sadd.s32 %s43, 1
      %s45 = scalar_select %p42, %s43, %s44
      %p48 = pneg %p42
      %p49 = scmp.eq.s32.totalorder %s19, 3
      %p50 = por %p48, %p49
      %p51 = scmp.ne.s32.totalorder %s43, %s46
      %p52 = scmp.eq.s32.totalorder %s19, 0
      %p53 = por %p51, %p52
      %p54 = scmp.ne.s32.totalorder %s43, %s46
      %p55 = scmp.eq.s32.totalorder %s24, 3
      %p56 = por %p54, %p55
      %p57 = scmp.ne.s32.totalorder %s46, %s47
      %p58 = scmp.eq.s32.totalorder %s24, 0
      %p59 = por %p57, %p58
      %p60 = scmp.ne.s32.totalorder %s46, %s47
      %p61 = scmp.eq.s32.totalorder %s25, 3
      %p62 = por %p60, %p61
      %p64 = scmp.ne.s32.totalorder %s47, %s63
      %p65 = scmp.eq.s32.totalorder %s25, 0
      %p66 = por %p64, %p65
      %s68 = sadd.s32 %s67, 1
      %p71 = scmp.eq.s32.totalorder %s19, 3
      %p72 = scmp.ne.s32.totalorder %s67, %s69
      %p73 = scmp.eq.s32.totalorder %s19, 0
      %p74 = por %p72, %p73
      %p75 = scmp.ne.s32.totalorder %s67, %s69
      %p76 = scmp.eq.s32.totalorder %s24, 3
      %p77 = por %p75, %p76
      %p78 = scmp.ne.s32.totalorder %s69, %s70
      %p79 = scmp.eq.s32.totalorder %s24, 0
      %p80 = por %p78, %p79
      %p81 = scmp.ne.s32.totalorder %s69, %s70
      %p82 = scmp.eq.s32.totalorder %s25, 3
      %p83 = por %p81, %p82
      %p85 = scmp.ne.s32.totalorder %s70, %s84
      %p86 = scmp.eq.s32.totalorder %s25, 0
      %p87 = por %p85, %p86
      %s89 = sadd.s32 %s88, 1
      %p92 = scmp.eq.s32.totalorder %s19, 3
      %p93 = scmp.ne.s32.totalorder %s88, %s90
      %p94 = scmp.eq.s32.totalorder %s19, 0
      %p95 = por %p93, %p94
      %p96 = scmp.ne.s32.totalorder %s88, %s90
      %p97 = scmp.eq.s32.totalorder %s24, 3
      %p98 = por %p96, %p97
      %p99 = scmp.ne.s32.totalorder %s90, %s91
      %p100 = scmp.eq.s32.totalorder %s24, 0
      %p101 = por %p99, %p100
      %p102 = scmp.ne.s32.totalorder %s90, %s91
      %p103 = scmp.eq.s32.totalorder %s25, 3
      %p104 = por %p102, %p103
      %p106 = scmp.ne.s32.totalorder %s91, %s105
      %p107 = scmp.eq.s32.totalorder %s25, 0
      %p108 = por %p106, %p107
      %s110 = sadd.s32 %s109, 1
      %p113 = scmp.eq.s32.totalorder %s19, 3
      %p114 = scmp.ne.s32.totalorder %s109, %s111
      %p115 = scmp.eq.s32.totalorder %s19, 0
      %p116 = por %p114, %p115
      %p117 = scmp.ne.s32.totalorder %s109, %s111
      %p118 = scmp.eq.s32.totalorder %s24, 3
      %p119 = por %p117, %p118
      %p120 = scmp.ne.s32.totalorder %s111, %s112
      %p121 = scmp.eq.s32.totalorder %s24, 0
      %p122 = por %p120, %p121
      %p123 = scmp.ne.s32.totalorder %s111, %s112
      %p124 = scmp.eq.s32.totalorder %s25, 3
      %p125 = por %p123, %p124
      %p127 = scmp.ne.s32.totalorder %s112, %s126
      %p128 = scmp.eq.s32.totalorder %s25, 0
      %p129 = por %p127, %p128
      %s131 = sadd.s32 %s130, 1
      %p134 = scmp.eq.s32.totalorder %s19, 3
      %p135 = scmp.ne.s32.totalorder %s130, %s132
      %p136 = scmp.eq.s32.totalorder %s19, 0
      %p137 = por %p135, %p136
      %p138 = scmp.ne.s32.totalorder %s130, %s132
      %p139 = scmp.eq.s32.totalorder %s24, 3
      %p140 = por %p138, %p139
      %p141 = scmp.ne.s32.totalorder %s132, %s133
      %p142 = scmp.eq.s32.totalorder %s24, 0
      %p143 = por %p141, %p142
      %p144 = scmp.ne.s32.totalorder %s132, %s133
      %p145 = scmp.eq.s32.totalorder %s25, 3
      %p146 = por %p144, %p145
      %p148 = scmp.ne.s32.totalorder %s133, %s147
      %p149 = scmp.eq.s32.totalorder %s25, 0
      %p150 = por %p148, %p149
      %s151 = ssub.s32 %s26, %s38
      %p152 = scmp.eq.s32.totalorder %s151, 0
      %s154 = sadd.s32 %s153, 1
      %s155 = scalar_select %p152, %s153, %s154
      %p158 = pneg %p152
      %p159 = scmp.eq.s32.totalorder %s19, 3
      %p160 = por %p158, %p159
      %p161 = scmp.ne.s32.totalorder %s153, %s156
      %p162 = scmp.eq.s32.totalorder %s19, 0
      %p163 = por %p161, %p162
      %p164 = scmp.ne.s32.totalorder %s153, %s156
      %p165 = scmp.eq.s32.totalorder %s24, 3
      %p166 = por %p164, %p165
      %p167 = scmp.ne.s32.totalorder %s156, %s157
      %p168 = scmp.eq.s32.totalorder %s24, 0
      %p169 = por %p167, %p168
      %p170 = scmp.ne.s32.totalorder %s156, %s157
      %p171 = scmp.eq.s32.totalorder %s25, 3
      %p172 = por %p170, %p171
      %p174 = scmp.ne.s32.totalorder %s157, %s173
      %p175 = scmp.eq.s32.totalorder %s25, 0
      %p176 = por %p174, %p175
      %s177 = ssub.s32 %s26, %s38
      %s178 = ssub.s32 %s27, %s34
      %s179 = sor.u32 %s177, %s178
      %p180 = scmp.eq.s32.totalorder %s179, 0
      %s182 = sadd.s32 %s181, 1
      %s183 = scalar_select %p180, %s181, %s182
      %p186 = pneg %p180
      %p187 = scmp.eq.s32.totalorder %s19, 3
      %p188 = por %p186, %p187
      %p189 = scmp.ne.s32.totalorder %s181, %s184
      %p190 = scmp.eq.s32.totalorder %s19, 0
      %p191 = por %p189, %p190
      %p192 = scmp.ne.s32.totalorder %s181, %s184
      %p193 = scmp.eq.s32.totalorder %s24, 3
      %p194 = por %p192, %p193
      %p195 = scmp.ne.s32.totalorder %s184, %s185
      %p196 = scmp.eq.s32.totalorder %s24, 0
      %p197 = por %p195, %p196
      %p198 = scmp.ne.s32.totalorder %s184, %s185
      %p199 = scmp.eq.s32.totalorder %s25, 3
      %p200 = por %p198, %p199
      %p202 = scmp.ne.s32.totalorder %s185, %s201
      %p203 = scmp.eq.s32.totalorder %s25, 0
      %p204 = por %p202, %p203
      %p205 = scmp.le.s32.totalorder 1, %s19
      %p206 = scmp.lt.s32.totalorder %s19, 5
      %p207 = pnand %p205, %p206
      %p208 = pneg %p207
      // Predicated region
      $region9: #{tpu_custom_call.1} parent=5 // pred_check
        _
      $region10: #{tpu_custom_call.1} parent=5 // pred_check_branch
        %210 = sbr.rel (%p207) target = $region12
      $region11: #{tpu_custom_call.1} parent=5 // pred_region
        %s211 = ssub.s32 %s19, 1
        // Predicated region
        $region13: #{tpu_custom_call.1} parent=11 // pred_check
          %p212 = pneg %p80
        $region14: #{tpu_custom_call.1} parent=11 // pred_check_branch
          %214 = sbr.rel (%p212) target = $region16
        $region15: #{tpu_custom_call.1} parent=11 // pred_region
          _
        $region16: #{tpu_custom_call.1} parent=11 // pred_fallthru
          _
        // Predicated region
        $region17: #{tpu_custom_call.1} parent=11 // pred_check
          %p215 = pneg %p101
        $region18: #{tpu_custom_call.1} parent=11 // pred_check_branch
          %217 = sbr.rel (%p215) target = $region20
        $region19: #{tpu_custom_call.1} parent=11 // pred_region
          _
        $region20: #{tpu_custom_call.1} parent=11 // pred_fallthru
          _
        // Predicated region
        $region21: #{tpu_custom_call.1} parent=11 // pred_check
          %p218 = pneg %p122
        $region22: #{tpu_custom_call.1} parent=11 // pred_check_branch
          %220 = sbr.rel (%p218) target = $region24
        $region23: #{tpu_custom_call.1} parent=11 // pred_region
          _
        $region24: #{tpu_custom_call.1} parent=11 // pred_fallthru
          _
        // Predicated region
        $region25: #{tpu_custom_call.1} parent=11 // pred_check
          %p221 = pneg %p143
        $region26: #{tpu_custom_call.1} parent=11 // pred_check_branch
          %223 = sbr.rel (%p221) target = $region28
        $region27: #{tpu_custom_call.1} parent=11 // pred_region
          _
        $region28: #{tpu_custom_call.1} parent=11 // pred_fallthru
          _
      $region12: #{tpu_custom_call.1} parent=5 // pred_fallthru
        _
      %p224 = scmp.lt.s32.totalorder %s19, 4
      // Predicated region
      $region29: #{tpu_custom_call.1} parent=5 // pred_check
        %p225 = pneg %p224
      $region30: #{tpu_custom_call.1} parent=5 // pred_check_branch
        %227 = sbr.rel (%p225) target = $region32
      $region31: #{tpu_custom_call.1} parent=5 // pred_region
        // Predicated region
        $region33: #{tpu_custom_call.1} parent=31 // pred_check
          %p228 = pneg %p53
        $region34: #{tpu_custom_call.1} parent=31 // pred_check_branch
          %230 = sbr.rel (%p228) target = $region36
        $region35: #{tpu_custom_call.1} parent=31 // pred_region
          %s231 = sand.u32 %s43, 1
          %s232 = scalar_lea.sflag [#allocation4], %s231
          %s233 = sand.u32 %s43, 1
          %s234 = smul.addr %s233, 32
          %s235 = scalar_lea.vmem [#allocation3], %s234
          %s237 = ssub.s32 512, 512
          %238 = vsyncadd %s232, %s237
          %s239 = smul.addr %s26, 8
          %s240 = sadd.s32 %s27, %s239
          %s241 = smul.addr %s240, 128
          %s242 = scalar_lea.hbm %s0, %s241
          %s243 = sshll.u32 %s235, 4
          %s244 = int_to_ptr.vmem [resolvable:$true] %s243
          %249 = dma.hbm_to_vmem [thread:$0]  %s242, 512, %s244, %s232, 256, 128, 8
        $region36: #{tpu_custom_call.1} parent=31 // pred_fallthru
          _
        // Predicated region
        $region37: #{tpu_custom_call.1} parent=31 // pred_check
          %p250 = pneg %p163
        $region38: #{tpu_custom_call.1} parent=31 // pred_check_branch
          %252 = sbr.rel (%p250) target = $region40
        $region39: #{tpu_custom_call.1} parent=31 // pred_region
          %p253 = scmp.lt.s32.totalorder %s26, 1
          %s254 = scalar_select %p253, %s26, 1
          %s255 = smul.addr %s254, 4
          %s256 = smul.addr %s255, 8
          %s257 = scalar_lea.vmem %s5, %s256
        $region40: #{tpu_custom_call.1} parent=31 // pred_fallthru
          _
      $region32: #{tpu_custom_call.1} parent=5 // pred_fallthru
        _
      %p258 = scmp.le.s32.totalorder 1, %s19
      %p259 = scmp.lt.s32.totalorder %s19, 5
      %p260 = pnand %p258, %p259
      %p261 = pneg %p260
      // Predicated region
      $region41: #{tpu_custom_call.1} parent=5 // pred_check
        _
      $region42: #{tpu_custom_call.1} parent=5 // pred_check_branch
        %263 = sbr.rel (%p260) target = $region44
      $region43: #{tpu_custom_call.1} parent=5 // pred_region
        %s264 = ssub.s32 %s19, 1
        %s265 = sand.u32 %s46, 1
        %s266 = scalar_lea.sflag [#allocation4], %s265
        %s267 = sand.u32 %s46, 1
        %s268 = smul.addr %s267, 32
        %s269 = scalar_lea.vmem [#allocation3], %s268
        // Predicated region
        $region45: #{tpu_custom_call.1} parent=43 // pred_check
          %p270 = pneg %p59
        $region46: #{tpu_custom_call.1} parent=43 // pred_check_branch
          %272 = sbr.rel (%p270) target = $region48
        $region47: #{tpu_custom_call.1} parent=43 // pred_region
          %273 = dma.done %s266, 512
        $region48: #{tpu_custom_call.1} parent=43 // pred_fallthru
          _
        %s274 = sand.u32 %s46, 1
        %s275 = scalar_lea.sflag [#allocation4], %s274
        %s276 = sand.u32 %s46, 1
        %s277 = smul.addr %s276, 32
        %s278 = scalar_lea.vmem [#allocation3], %s277
        %p279 = pneg %p59
        %p280 = pneg %p56
        %p281 = pneg %p80
        %p282 = pneg %p77
        %p283 = pneg %p101
        %p284 = pneg %p98
        %p285 = pneg %p122
        %p286 = pneg %p119
        %p287 = pneg %p143
        %p288 = pneg %p140
        %p289 = scmp.lt.s32.totalorder %s28, 1
        %s290 = scalar_select %p289, %s28, 1
        %s291 = smul.addr %s290, 4
        %s292 = smul.addr %s291, 8
        %s293 = scalar_lea.vmem %s5, %s292
        %p294 = pneg %p169
        %p295 = pneg %p166
        %p296 = pneg %p197
        %p297 = pneg %p194
        %s298 = sand.u32 %s184, 1
        %s299 = scalar_lea.sflag [#allocation5], %s298
        %s300 = sand.u32 %s184, 1
        %s301 = smul.addr %s300, 32
        %s302 = scalar_lea.vmem [#allocation6], %s301
        %p303 = scmp.lt.s32.totalorder %s28, 1
        %s304 = scalar_select %p303, %s28, 1
        %s305 = smul.addr %s304, 4
        %s306 = smul.addr %s305, 8
        %s307 = scalar_lea.vmem %s5, %s306
        %v308 = vld [vmem:[%s269] sm:$0xff]
        %v309 = vld [vmem:[%s269 + $0x8] sm:$0xff]
        %v310 = vld [vmem:[%s269 + $0x10] sm:$0xff]
        %v311 = vld [vmem:[%s269 + $0x18] sm:$0xff]
        %v312 = vld [vmem:[%s1] sm:$0xff]
        %v313 = vld [vmem:[%s1 + $0x8] sm:$0xff]
        %v314 = vld [vmem:[%s2] sm:$0xff]
        %v315 = vld [vmem:[%s2 + $0x8] sm:$0xff]
        %317 = vset.pattern.permute.xlu0 0
        %318 = vperm.xlu0 %317, %v314
        %v319 = vpop.permute.xlu0 %318
        %322 = vset.pattern.permute.xlu0 0
        %323 = vperm.xlu0 %322, %v315
        %v324 = vpop.permute.xlu0 %323
        %vm326 = vcmask 261120
        %v328 = vsel %vm326, %v312, 0
        %v331 = vsel %vm326, %v313, 0
        %333 = vmatprep.subr.mxu0 0.0
        %334 = vmatpush1.msra.mxu0 %v308
        %335 = vmatprep.subr.mxu0 0.0
        %336 = vmatpush1.msra.mxu0 %v309
        %337 = vmatprep.subr.mxu0 0.0
        %338 = vmatpush1.msra.mxu0 %v310
        %339 = vmatprep.subr.mxu0 0.0
        %340 = vmatpush1.msra.mxu0 %v311
        %341 = vmatprep.subr.mxu0 0.0
        %342 = vmatpush1.msra.mxu0 0.0
        %343 = vmatprep.subr.mxu0 0.0
        %344 = vmatpush1.msra.mxu0 0.0
        %345 = vmatprep.subr.mxu0 0.0
        %346 = vmatpush1.msra.mxu0 0.0
        %347 = vmatprep.subr.mxu0 0.0
        %348 = vmatpush1.msra.mxu0 0.0
        %349 = vmatprep.subr.mxu0 0.0
        %350 = vmatpush1.msra.mxu0 0.0
        %351 = vmatprep.subr.mxu0 0.0
        %352 = vmatpush1.msra.mxu0 0.0
        %353 = vmatprep.subr.mxu0 0.0
        %354 = vmatpush1.msra.mxu0 0.0
        %355 = vmatprep.subr.mxu0 0.0
        %356 = vmatpush1.msra.mxu0 0.0
        %357 = vmatprep.subr.mxu0 0.0
        %358 = vmatpush1.msra.mxu0 0.0
        %359 = vmatprep.subr.mxu0 0.0
        %360 = vmatpush1.msra.mxu0 0.0
        %361 = vmatprep.subr.mxu0 0.0
        %362 = vmatpush1.msra.mxu0 0.0
        %363 = vmatprep.subr.mxu0 0.0
        %364 = vmatpush1.msra.mxu0 0.0
        %365 = vmatprep.subr.mxu0 0.0
        %366 = vmatpush1.msra.mxu0 0.0
        %367 = vmatprep.subr.mxu0 0.0
        %368 = vmatpush1.msra.mxu0 0.0
        %369 = vmatprep.subr.mxu0 0.0
        %370 = vmatpush1.msra.mxu0 0.0
        %371 = vmatprep.subr.mxu0 0.0
        %372 = vmatpush1.msra.mxu0 0.0
        %373 = vmatprep.subr.mxu0 0.0
        %374 = vmatpush1.msra.mxu0 0.0
        %375 = vmatprep.subr.mxu0 0.0
        %376 = vmatpush1.msra.mxu0 0.0
        %377 = vmatprep.subr.mxu0 0.0
        %378 = vmatpush1.msra.mxu0 0.0
        %379 = vmatprep.subr.mxu0 0.0
        %380 = vmatpush1.msra.mxu0 0.0
        %381 = vmatprep.subr.mxu0 0.0
        %382 = vmatpush1.msra.mxu0 0.0
        %383 = vmatprep.subr.mxu0 0.0
        %384 = vmatpush1.msra.mxu0 0.0
        %385 = vmatprep.subr.mxu0 0.0
        %386 = vmatpush1.msra.mxu0 0.0
        %387 = vmatprep.subr.mxu0 0.0
        %388 = vmatpush1.msra.mxu0 0.0
        %389 = vmatprep.subr.mxu0 0.0
        %390 = vmatpush1.msra.mxu0 0.0
        %391 = vmatprep.subr.mxu0 0.0
        %392 = vmatpush1.msra.mxu0 0.0
        %393 = vmatprep.subr.mxu0 0.0
        %394 = vmatpush1.msra.mxu0 0.0
        %395 = vmatprep.subr.mxu0 0.0
        %396 = vmatpush1.msra.mxu0 0.0
        %397 = vmatprep.mubr.f32.mxu0 0.0
        %398 = vmatmul.mubr.f32.gmra.mrb[0].mxu0 %v328
        %v399 = vpop.f32.mrb[0].mxu0
        %v400 = vadd.f32 %v319, %v399
        %v401 = vpop.f32.mrb[0].mxu0
        %402 = vmatprep.mubr.f32.mxu0 0.0
        %403 = vmatmul.mubr.f32.gmra.mrb[0].mxu0 %v331
        %v404 = vpop.f32.mrb[0].mxu0
        %v405 = vadd.f32 %v324, %v404
        %v406 = vpop.f32.mrb[0].mxu0
        %407 = vdwg.mxu0
        %v408 = vmax.f32 %v400, 0.0
        %v409 = vmax.f32 %v405, 0.0
        %v410 = vld [vmem:[%s3] sm:$0xff]
        %v411 = vld [vmem:[%s3 + $0x8] sm:$0xff]
        %413 = vset.pattern.permute.xlu0 0
        %414 = vperm.xlu0 %413, %v410
        %v415 = vpop.permute.xlu0 %414
        %418 = vset.pattern.permute.xlu0 0
        %419 = vperm.xlu0 %418, %v411
        %v420 = vpop.permute.xlu0 %419
        %v422 = vmul.f32 %v408, %v415
        %v423 = vmul.f32 %v409, %v420
        %v424 = vadd.f32 %v422, %v423
        %v425 = vrot.slane %v424, 4
        %v426 = vadd.f32 %v424, %v425
        %v427 = vrot.slane %v426, 2
        %v428 = vadd.f32 %v426, %v427
        %v429 = vrot.slane %v428, 1
        %v430 = vadd.f32 %v428, %v429
        %s431 = sld [smem:[#allocation2]]
        %v432 = vstv %s431
        %v433 = vadd.f32 %v430, %v432
        %v434 = vxor.u32 %v433, 2147483648
        %v435 = vmul.f32 %v434, 1.442695
        %v436 = vpow.pop %v435
        %v437 = vadd.f32 %v436, 1.0
        %v438 = vrcp.pop %v437
        %v439 = vmul.f32 1.0, %v438
        %v440 = vld [vmem:[%s307] sm:$0xff]
        %v441 = vld [vmem:[%s307 + $0x8] sm:$0xff]
        %v442 = vld [vmem:[%s307 + $0x10] sm:$0xff]
        %v443 = vld [vmem:[%s307 + $0x18] sm:$0xff]
        %445 = vset.pattern.permute.xlu0 0
        %446 = vperm.xlu0 %445, %v440
        %v447 = vpop.permute.xlu0 %446
        %450 = vset.pattern.permute.xlu0 0
        %451 = vperm.xlu0 %450, %v441
        %v452 = vpop.permute.xlu0 %451
        %455 = vset.pattern.permute.xlu0 0
        %456 = vperm.xlu0 %455, %v442
        %v457 = vpop.permute.xlu0 %456
        %460 = vset.pattern.permute.xlu0 0
        %461 = vperm.xlu0 %460, %v443
        %v462 = vpop.permute.xlu0 %461
        %v464 = vadd.f32 %v439, %v447
        %v465 = vadd.f32 %v439, %v452
        %v466 = vadd.f32 %v439, %v457
        %v467 = vadd.f32 %v439, %v462
        %v468 = vmul.f32 %v308, %v464
        %v469 = vmul.f32 %v309, %v465
        %v470 = vmul.f32 %v310, %v466
        %v471 = vmul.f32 %v311, %v467
        %472 = vst [vmem:[%s302] sm:$0xff] %v468
        %473 = vst [vmem:[%s302 + $0x8] sm:$0xff] %v469
        %474 = vst [vmem:[%s302 + $0x10] sm:$0xff] %v470
        %475 = vst [vmem:[%s302 + $0x18] sm:$0xff] %v471
        %s476 = sand.u32 %s184, 1
        %s477 = scalar_lea.sflag [#allocation5], %s476
        %s478 = sand.u32 %s184, 1
        %s479 = smul.addr %s478, 32
        %s480 = scalar_lea.vmem [#allocation6], %s479
        // Predicated region
        $region49: #{tpu_custom_call.1} parent=43 // pred_check
          %p481 = pneg %p194
        $region50: #{tpu_custom_call.1} parent=43 // pred_check_branch
          %483 = sbr.rel (%p481) target = $region52
        $region51: #{tpu_custom_call.1} parent=43 // pred_region
          %s485 = ssub.s32 512, 512
          %486 = vsyncadd %s477, %s485
          %s487 = smul.addr %s28, 8
          %s488 = sadd.s32 %s29, %s487
          %s489 = smul.addr %s488, 128
          %s490 = scalar_lea.hbm %s6, %s489
          %s491 = sshll.u32 %s480, 4
          %s492 = int_to_ptr.vmem [resolvable:$true] %s491
          %497 = dma.vmem_to_hbm [thread:$0]  %s492, 512, %s490, %s477, 128, 256, 8
        $region52: #{tpu_custom_call.1} parent=43 // pred_fallthru
          _
      $region44: #{tpu_custom_call.1} parent=5 // pred_fallthru
        _
      %p498 = scmp.le.s32.totalorder 2, %s19
      // Predicated region
      $region53: #{tpu_custom_call.1} parent=5 // pred_check
        %p499 = pneg %p498
      $region54: #{tpu_custom_call.1} parent=5 // pred_check_branch
        %501 = sbr.rel (%p499) target = $region56
      $region55: #{tpu_custom_call.1} parent=5 // pred_region
        %s502 = ssub.s32 %s19, 2
        // Predicated region
        $region57: #{tpu_custom_call.1} parent=55 // pred_check
          %p503 = pneg %p200
        $region58: #{tpu_custom_call.1} parent=55 // pred_check_branch
          %505 = sbr.rel (%p503) target = $region60
        $region59: #{tpu_custom_call.1} parent=55 // pred_region
          %s506 = sand.u32 %s185, 1
          %s507 = scalar_lea.sflag [#allocation5], %s506
          %s508 = sand.u32 %s185, 1
          %s509 = smul.addr %s508, 32
          %s510 = scalar_lea.vmem [#allocation6], %s509
          %511 = dma.done %s507, 512
        $region60: #{tpu_custom_call.1} parent=55 // pred_fallthru
          _
      $region56: #{tpu_custom_call.1} parent=5 // pred_fallthru
        _
    $region6: #{tpu_custom_call.1} parent=1 // loop_footer
      %s23 = sadd.s32 1, %s19
    $region7: #{tpu_custom_call.1} parent=1 // loop_footer_branch
      %18 = sbr.rel target = $region3
    $region8: #{tpu_custom_call.1} parent=1 // loop_exit
      _
    %512 = vsyncpa [#allocation4], 1
    %s513 = scalar_lea.sflag [#allocation4], 1
    %514 = vsyncpa %s513, 1
    %515 = vsyncpa [#allocation5], 1
    %s516 = scalar_lea.sflag [#allocation5], 1
    %517 = vsyncpa %s516, 1

</llo_original>
